<compile_context>
chip_gen: v7x
topology: tpu7x:2x2x1
jax: 0.10.0
libtpu: 0.0.40
codegen_flags: <defaults>
</compile_context>

<pallas_src>
import functools
import math

import jax
import jax.numpy as jnp
from jax import lax
from jax.experimental import pallas as pl
from jax.experimental.pallas import tpu as pltpu  # noqa: F401


def _layernorm(x, g, b, eps=1e-5):
    # PyTorch nn.LayerNorm: biased variance, eps inside rsqrt.
    mu = jnp.mean(x, axis=-1, keepdims=True)
    var = jnp.mean(jnp.square(x - mu), axis=-1, keepdims=True)
    return (x - mu) * lax.rsqrt(var + eps) * g + b


def simple_transformer_kernel(
    src_ref,      # [B*S, n_token]
    pe_ref,       # [B*S, D]    positional encoding tiled over batch
    mask_ref,     # [S, S]      additive causal mask (0 / -1e30)
    enc_w_ref,    # [n_token, D]
    qkv_w_ref,    # [D, 3D]     fused Q|K|V projection weight
    attn_ow_ref,  # [D, D]
    ff1_w_ref,    # [D, FF]
    ff2_w_ref,    # [FF, D]
    dec_w_ref,    # [D, O_pad]  lane-padded decoder weight
    vec_ref,      # [10, O_pad>=128]  packed biases / LayerNorm params
    out_ref,      # [B*S, O_pad]
    *, B, S, D, FF, compute_dtype,
):
    def mm(a, w):
        # bf16 operands (compute_dtype) are the v6e/v7x lever at scale;
        # accumulation stays f32 via preferred_element_type.
        return jnp.dot(a.astype(compute_dtype), w.astype(compute_dtype),
                       preferred_element_type=jnp.float32)

    # --- unpack the one-row-per-vector packed bias/LN slab ---
    enc_b = vec_ref[0:1, :D]
    qkv_b = vec_ref[1:2, :3 * D]
    attn_ob = vec_ref[2:3, :D]
    ln1_g = vec_ref[3:4, :D]
    ln1_b = vec_ref[4:5, :D]
    ff1_b = vec_ref[5:6, :FF]
    ff2_b = vec_ref[6:7, :D]
    ln2_g = vec_ref[7:8, :D]
    ln2_b = vec_ref[8:9, :D]
    dec_b = vec_ref[9:10, :]

    # --- input Linear, * sqrt(d_model), + positional encoding (dropout p=0) ---
    x = src_ref[...]
    h = mm(x, enc_w_ref[...]) + enc_b
    h = h * jnp.float32(math.sqrt(D)) + pe_ref[...]

    # --- self-attention (nhead=1), fused QKV projection ---
    qkv = mm(h, qkv_w_ref[...]) + qkv_b                  # [B*S, 3D]
    q = qkv[:, 0:D].reshape(B, S, D)
    k = qkv[:, D:2 * D].reshape(B, S, D)
    v = qkv[:, 2 * D:3 * D].reshape(B, S, D)

    scores = jnp.einsum('bqd,bkd->bqk', q, k,
                        preferred_element_type=jnp.float32)
    scores = scores * jnp.float32(1.0 / math.sqrt(D)) + mask_ref[...]
    scores = scores - jnp.max(scores, axis=-1, keepdims=True)
    p = jnp.exp(scores)
    p = p * pl.reciprocal(jnp.sum(p, axis=-1, keepdims=True), approx=True)
    ctx = jnp.einsum('bqk,bkd->bqd', p, v,
                     preferred_element_type=jnp.float32).reshape(B * S, D)
    attn = mm(ctx, attn_ow_ref[...]) + attn_ob

    # --- add & LayerNorm 1 (post-norm) ---
    h1 = _layernorm(h + attn, ln1_g, ln1_b)

    # --- feedforward: Linear -> ReLU -> Linear ---
    f = jnp.maximum(mm(h1, ff1_w_ref[...]) + ff1_b, 0.0)
    f = mm(f, ff2_w_ref[...]) + ff2_b

    # --- add & LayerNorm 2 ---
    h2 = _layernorm(h1 + f, ln2_g, ln2_b)

    # --- decoder Linear (lane-dense padded output) ---
    out = mm(h2, dec_w_ref[...]) + dec_b
    out_ref[...] = out.astype(out_ref.dtype)


def positional_encoding(seq_len, d_model):
    pos = jnp.arange(seq_len, dtype=jnp.float32)[:, None]
    div = jnp.exp(jnp.arange(0, d_model, 2, dtype=jnp.float32)
                  * (-math.log(10000.0) / d_model))
    pe = jnp.zeros((seq_len, d_model), jnp.float32)
    pe = pe.at[:, 0::2].set(jnp.sin(pos * div))
    pe = pe.at[:, 1::2].set(jnp.cos(pos * div))  # d_model even here
    return pe


def init_params(key, n_token, d_model, dim_feedforward, output_size):
    ks = jax.random.split(key, 7)

    def linear(k, fan_in, fan_out):
        kw, kb = jax.random.split(k)
        bound = 1.0 / math.sqrt(fan_in)
        w = jax.random.uniform(kw, (fan_in, fan_out), jnp.float32, -bound, bound)
        b = jax.random.uniform(kb, (1, fan_out), jnp.float32, -bound, bound)
        return w, b

    p = {}
    p["enc_w"], p["enc_b"] = linear(ks[0], n_token, d_model)
    p["q_w"], p["q_b"] = linear(ks[1], d_model, d_model)
    p["k_w"], p["k_b"] = linear(ks[2], d_model, d_model)
    p["v_w"], p["v_b"] = linear(ks[3], d_model, d_model)
    p["attn_ow"], p["attn_ob"] = linear(ks[4], d_model, d_model)
    p["ff1_w"], p["ff1_b"] = linear(ks[5], d_model, dim_feedforward)
    p["ff2_w"], p["ff2_b"] = linear(ks[6], dim_feedforward, d_model)
    kd = jax.random.fold_in(key, 123)
    p["dec_w"], p["dec_b"] = linear(kd, d_model, output_size)
    # LayerNorm params (PyTorch default init: gamma=1, beta=0)
    p["ln1_g"] = jnp.ones((1, d_model), jnp.float32)
    p["ln1_b"] = jnp.zeros((1, d_model), jnp.float32)
    p["ln2_g"] = jnp.ones((1, d_model), jnp.float32)
    p["ln2_b"] = jnp.zeros((1, d_model), jnp.float32)
    return p


def simple_transformer_forward(src, params, pe, compute_dtype=jnp.float32):
    B, S, NT = src.shape
    D = params["enc_w"].shape[1]
    FF = params["ff1_w"].shape[1]
    O = params["dec_w"].shape[1]
    LANES = 128
    O_PAD = max(LANES, ((O + LANES - 1) // LANES) * LANES)

    # Flatten batch*seq; tile PE over batch; additive causal mask (finite).
    src2d = src.reshape(B * S, NT)
    pe_t = jnp.tile(pe, (B, 1))                                    # [B*S, D]
    mask = jnp.triu(jnp.full((S, S), -1e30, jnp.float32), k=1)     # [S, S]

    # Fuse Q/K/V weights; lane-pad the decoder weight/bias.
    qkv_w = jnp.concatenate([params["q_w"], params["k_w"], params["v_w"]], axis=1)
    qkv_b = jnp.concatenate([params["q_b"], params["k_b"], params["v_b"]], axis=1)
    dec_w_pad = jnp.pad(params["dec_w"], ((0, 0), (0, O_PAD - O)))
    dec_b_pad = jnp.pad(params["dec_b"], ((0, 0), (0, O_PAD - O)))

    # Pack all tiny bias / LayerNorm vectors into a single [10, O_PAD] slab.
    def row(a):
        return jnp.pad(a, ((0, 0), (0, O_PAD - a.shape[1])))

    vec = jnp.concatenate([
        row(params["enc_b"]), row(qkv_b), row(params["attn_ob"]),
        row(params["ln1_g"]), row(params["ln1_b"]),
        row(params["ff1_b"]), row(params["ff2_b"]),
        row(params["ln2_g"]), row(params["ln2_b"]),
        dec_b_pad,
    ], axis=0)

    kernel = functools.partial(
        simple_transformer_kernel,
        B=B, S=S, D=D, FF=FF, compute_dtype=compute_dtype)

    # Single invocation (no grid): whole batch + all weights fit VMEM easily
    # at these shapes, so there is no per-sequence serial loop to pay for.
    out_pad = pl.pallas_call(
        kernel,
        out_shape=jax.ShapeDtypeStruct((B * S, O_PAD), jnp.float32),
    )(src2d, pe_t, mask, params["enc_w"], qkv_w, params["attn_ow"],
      params["ff1_w"], params["ff2_w"], dec_w_pad, vec)

    return out_pad[:, :O].reshape(B, S, O)


if __name__ == "__main__":
    # Small shapes consistent with SimpleTransformer(n_token, d_model,
    # dim_feedforward, output_size) defaults nlayers=1, nhead=1, dropout=0.
    # TODO(synk): nlayers>1 / nhead>1 variants not implemented (module defaults are 1).
    B, S = 2, 8
    n_token, d_model, dim_feedforward, output_size = 16, 32, 64, 8

    key = jax.random.PRNGKey(0)
    k_src, k_par = jax.random.split(key)
    src = jax.random.normal(k_src, (B, S, n_token), jnp.float32)

    params = init_params(k_par, n_token, d_model, dim_feedforward, output_size)
    pe = positional_encoding(S, d_model)

    out = simple_transformer_forward(src, params, pe)
    out = jax.block_until_ready(out)
    assert out.shape == (B, S, output_size)
    assert bool(jnp.all(jnp.isfinite(out)))
    print("KERNEL_OK")
</pallas_src>

<mosaic_0001>
module attributes {stable_mosaic.version = 11 : i64} {
  func.func @simple_transformer_kernel(%arg0: memref<16x16xf32, #tpu.memory_space<vmem>>, %arg1: memref<16x32xf32, #tpu.memory_space<vmem>>, %arg2: memref<8x8xf32, #tpu.memory_space<vmem>>, %arg3: memref<16x32xf32, #tpu.memory_space<vmem>>, %arg4: memref<32x96xf32, #tpu.memory_space<vmem>>, %arg5: memref<32x32xf32, #tpu.memory_space<vmem>>, %arg6: memref<32x64xf32, #tpu.memory_space<vmem>>, %arg7: memref<64x32xf32, #tpu.memory_space<vmem>>, %arg8: memref<32x128xf32, #tpu.memory_space<vmem>>, %arg9: memref<10x128xf32, #tpu.memory_space<vmem>>, %arg10: memref<16x128xf32, #tpu.memory_space<vmem>>) attributes {dimension_semantics = [], scalar_prefetch = 0 : i64, scratch_operands = 0 : i64, tpu.core_type = #tpu.core_type<tc>} {
    %c0 = arith.constant 0 : index
    %c0_0 = arith.constant 0 : index
    %0 = vector.load %arg9[%c0, %c0_0] : memref<10x128xf32, #tpu.memory_space<vmem>>, vector<1x32xf32>
    %c1 = arith.constant 1 : index
    %c0_1 = arith.constant 0 : index
    %1 = vector.load %arg9[%c1, %c0_1] : memref<10x128xf32, #tpu.memory_space<vmem>>, vector<1x96xf32>
    %c2 = arith.constant 2 : index
    %c0_2 = arith.constant 0 : index
    %2 = vector.load %arg9[%c2, %c0_2] : memref<10x128xf32, #tpu.memory_space<vmem>>, vector<1x32xf32>
    %c3 = arith.constant 3 : index
    %c0_3 = arith.constant 0 : index
    %3 = vector.load %arg9[%c3, %c0_3] : memref<10x128xf32, #tpu.memory_space<vmem>>, vector<1x32xf32>
    %c4 = arith.constant 4 : index
    %c0_4 = arith.constant 0 : index
    %4 = vector.load %arg9[%c4, %c0_4] : memref<10x128xf32, #tpu.memory_space<vmem>>, vector<1x32xf32>
    %c5 = arith.constant 5 : index
    %c0_5 = arith.constant 0 : index
    %5 = vector.load %arg9[%c5, %c0_5] : memref<10x128xf32, #tpu.memory_space<vmem>>, vector<1x64xf32>
    %c6 = arith.constant 6 : index
    %c0_6 = arith.constant 0 : index
    %6 = vector.load %arg9[%c6, %c0_6] : memref<10x128xf32, #tpu.memory_space<vmem>>, vector<1x32xf32>
    %c7 = arith.constant 7 : index
    %c0_7 = arith.constant 0 : index
    %7 = vector.load %arg9[%c7, %c0_7] : memref<10x128xf32, #tpu.memory_space<vmem>>, vector<1x32xf32>
    %c8 = arith.constant 8 : index
    %c0_8 = arith.constant 0 : index
    %8 = vector.load %arg9[%c8, %c0_8] : memref<10x128xf32, #tpu.memory_space<vmem>>, vector<1x32xf32>
    %c9 = arith.constant 9 : index
    %c0_9 = arith.constant 0 : index
    %9 = vector.load %arg9[%c9, %c0_9] : memref<10x128xf32, #tpu.memory_space<vmem>>, vector<1x128xf32>
    %c0_10 = arith.constant 0 : index
    %c0_11 = arith.constant 0 : index
    %10 = vector.load %arg0[%c0_10, %c0_11] : memref<16x16xf32, #tpu.memory_space<vmem>>, vector<16x16xf32>
    %c0_12 = arith.constant 0 : index
    %c0_13 = arith.constant 0 : index
    %11 = vector.load %arg3[%c0_12, %c0_13] : memref<16x32xf32, #tpu.memory_space<vmem>>, vector<16x32xf32>
    %cst = arith.constant dense<0.000000e+00> : vector<16x32xf32>
    %12 = tpu.matmul %10, %11, %cst {dimension_numbers = #tpu.dot_dimension_numbers<[1], [0], [0], [1], [0, 0, 1, 1], [], []>} : vector<16x16xf32>, vector<16x32xf32>, vector<16x32xf32> -> vector<16x32xf32>
    %13 = vector.broadcast %0 : vector<1x32xf32> to vector<16x32xf32>
    %14 = arith.addf %12, %13 : vector<16x32xf32>
    %cst_14 = arith.constant 5.65685415 : f32
    %15 = vector.broadcast %cst_14 : f32 to vector<16x32xf32>
    %16 = arith.mulf %14, %15 : vector<16x32xf32>
    %c0_15 = arith.constant 0 : index
    %c0_16 = arith.constant 0 : index
    %17 = vector.load %arg1[%c0_15, %c0_16] : memref<16x32xf32, #tpu.memory_space<vmem>>, vector<16x32xf32>
    %18 = arith.addf %16, %17 : vector<16x32xf32>
    %c0_17 = arith.constant 0 : index
    %c0_18 = arith.constant 0 : index
    %19 = vector.load %arg4[%c0_17, %c0_18] : memref<32x96xf32, #tpu.memory_space<vmem>>, vector<32x96xf32>
    %cst_19 = arith.constant dense<0.000000e+00> : vector<16x96xf32>
    %20 = tpu.matmul %18, %19, %cst_19 {dimension_numbers = #tpu.dot_dimension_numbers<[1], [0], [0], [1], [0, 0, 1, 1], [], []>} : vector<16x32xf32>, vector<32x96xf32>, vector<16x96xf32> -> vector<16x96xf32>
    %21 = vector.broadcast %1 : vector<1x96xf32> to vector<16x96xf32>
    %22 = arith.addf %20, %21 : vector<16x96xf32>
    %23 = vector.extract_strided_slice %22 {offsets = [0, 0], sizes = [16, 32], strides = [1, 1]} : vector<16x96xf32> to vector<16x32xf32>
    %24 = vector.shape_cast %23 : vector<16x32xf32> to vector<2x8x32xf32>
    %25 = vector.extract_strided_slice %22 {offsets = [0, 32], sizes = [16, 32], strides = [1, 1]} : vector<16x96xf32> to vector<16x32xf32>
    %26 = vector.shape_cast %25 : vector<16x32xf32> to vector<2x8x32xf32>
    %27 = vector.extract_strided_slice %22 {offsets = [0, 64], sizes = [16, 32], strides = [1, 1]} : vector<16x96xf32> to vector<16x32xf32>
    %28 = vector.shape_cast %27 : vector<16x32xf32> to vector<2x8x32xf32>
    "tpu.trace_start"() <{level = 10 : i32, message = "bqd,bkd->bqk"}> : () -> ()
    %cst_20 = arith.constant dense<0.000000e+00> : vector<2x8x8xf32>
    %29 = tpu.matmul %24, %26, %cst_20 {dimension_numbers = #tpu.dot_dimension_numbers<[2], [2], [1], [1], [0, 0, 0, 1, 1, 1], [0], [0]>} : vector<2x8x32xf32>, vector<2x8x32xf32>, vector<2x8x8xf32> -> vector<2x8x8xf32>
    "tpu.trace_stop"() : () -> ()
    %cst_21 = arith.constant 0.176776692 : f32
    %30 = vector.broadcast %cst_21 : f32 to vector<2x8x8xf32>
    %31 = arith.mulf %29, %30 : vector<2x8x8xf32>
    %c0_22 = arith.constant 0 : index
    %c0_23 = arith.constant 0 : index
    %32 = vector.load %arg2[%c0_22, %c0_23] : memref<8x8xf32, #tpu.memory_space<vmem>>, vector<8x8xf32>
    %33 = vector.shape_cast %32 : vector<8x8xf32> to vector<1x8x8xf32>
    %34 = vector.broadcast %33 : vector<1x8x8xf32> to vector<2x8x8xf32>
    %35 = arith.addf %31, %34 : vector<2x8x8xf32>
    %cst_24 = arith.constant dense<0xFF800000> : vector<2x8xf32>
    %36 = vector.multi_reduction <maximumf>, %35, %cst_24 [2] : vector<2x8x8xf32> to vector<2x8xf32>
    %37 = vector.shape_cast %36 : vector<2x8xf32> to vector<2x8x1xf32>
    %38 = vector.broadcast %37 : vector<2x8x1xf32> to vector<2x8x8xf32>
    %39 = arith.subf %35, %38 : vector<2x8x8xf32>
    %40 = math.exp %39 : vector<2x8x8xf32>
    %cst_25 = arith.constant dense<0.000000e+00> : vector<2x8xf32>
    %41 = vector.multi_reduction <add>, %40, %cst_25 [2] : vector<2x8x8xf32> to vector<2x8xf32>
    %42 = vector.shape_cast %41 : vector<2x8xf32> to vector<2x8x1xf32>
    %43 = tpu.reciprocal %42 {approx = true} : vector<2x8x1xf32> -> vector<2x8x1xf32>
    %44 = vector.broadcast %43 : vector<2x8x1xf32> to vector<2x8x8xf32>
    %45 = arith.mulf %40, %44 : vector<2x8x8xf32>
    "tpu.trace_start"() <{level = 10 : i32, message = "bqk,bkd->bqd"}> : () -> ()
    %cst_26 = arith.constant dense<0.000000e+00> : vector<2x8x32xf32>
    %46 = tpu.matmul %45, %28, %cst_26 {dimension_numbers = #tpu.dot_dimension_numbers<[2], [1], [1], [2], [0, 0, 0, 1, 1, 2], [0], [0]>} : vector<2x8x8xf32>, vector<2x8x32xf32>, vector<2x8x32xf32> -> vector<2x8x32xf32>
    "tpu.trace_stop"() : () -> ()
    %47 = vector.shape_cast %46 : vector<2x8x32xf32> to vector<16x32xf32>
    %c0_27 = arith.constant 0 : index
    %c0_28 = arith.constant 0 : index
    %48 = vector.load %arg5[%c0_27, %c0_28] : memref<32x32xf32, #tpu.memory_space<vmem>>, vector<32x32xf32>
    %cst_29 = arith.constant dense<0.000000e+00> : vector<16x32xf32>
    %49 = tpu.matmul %47, %48, %cst_29 {dimension_numbers = #tpu.dot_dimension_numbers<[1], [0], [0], [1], [0, 0, 1, 1], [], []>} : vector<16x32xf32>, vector<32x32xf32>, vector<16x32xf32> -> vector<16x32xf32>
    %50 = vector.broadcast %2 : vector<1x32xf32> to vector<16x32xf32>
    %51 = arith.addf %49, %50 : vector<16x32xf32>
    %52 = arith.addf %18, %51 : vector<16x32xf32>
    %cst_30 = arith.constant dense<0.000000e+00> : vector<16xf32>
    %53 = vector.multi_reduction <add>, %52, %cst_30 [1] : vector<16x32xf32> to vector<16xf32>
    %54 = vector.shape_cast %53 : vector<16xf32> to vector<16x1xf32>
    %cst_31 = arith.constant 3.200000e+01 : f32
    %55 = vector.broadcast %cst_31 : f32 to vector<16x1xf32>
    %56 = arith.divf %54, %55 : vector<16x1xf32>
    %57 = vector.broadcast %56 : vector<16x1xf32> to vector<16x32xf32>
    %58 = arith.subf %52, %57 : vector<16x32xf32>
    %59 = arith.mulf %58, %58 : vector<16x32xf32>
    %cst_32 = arith.constant dense<0.000000e+00> : vector<16xf32>
    %60 = vector.multi_reduction <add>, %59, %cst_32 [1] : vector<16x32xf32> to vector<16xf32>
    %61 = vector.shape_cast %60 : vector<16xf32> to vector<16x1xf32>
    %cst_33 = arith.constant 3.200000e+01 : f32
    %62 = vector.broadcast %cst_33 : f32 to vector<16x1xf32>
    %63 = arith.divf %61, %62 : vector<16x1xf32>
    %64 = vector.broadcast %56 : vector<16x1xf32> to vector<16x32xf32>
    %65 = arith.subf %52, %64 : vector<16x32xf32>
    %cst_34 = arith.constant 9.99999974E-6 : f32
    %66 = vector.broadcast %cst_34 : f32 to vector<16x1xf32>
    %67 = arith.addf %63, %66 : vector<16x1xf32>
    %68 = math.rsqrt %67 : vector<16x1xf32>
    %69 = vector.broadcast %68 : vector<16x1xf32> to vector<16x32xf32>
    %70 = arith.mulf %65, %69 : vector<16x32xf32>
    %71 = vector.broadcast %3 : vector<1x32xf32> to vector<16x32xf32>
    %72 = arith.mulf %70, %71 : vector<16x32xf32>
    %73 = vector.broadcast %4 : vector<1x32xf32> to vector<16x32xf32>
    %74 = arith.addf %72, %73 : vector<16x32xf32>
    %c0_35 = arith.constant 0 : index
    %c0_36 = arith.constant 0 : index
    %75 = vector.load %arg6[%c0_35, %c0_36] : memref<32x64xf32, #tpu.memory_space<vmem>>, vector<32x64xf32>
    %cst_37 = arith.constant dense<0.000000e+00> : vector<16x64xf32>
    %76 = tpu.matmul %74, %75, %cst_37 {dimension_numbers = #tpu.dot_dimension_numbers<[1], [0], [0], [1], [0, 0, 1, 1], [], []>} : vector<16x32xf32>, vector<32x64xf32>, vector<16x64xf32> -> vector<16x64xf32>
    %77 = vector.broadcast %5 : vector<1x64xf32> to vector<16x64xf32>
    %78 = arith.addf %76, %77 : vector<16x64xf32>
    %cst_38 = arith.constant 0.000000e+00 : f32
    %79 = vector.broadcast %cst_38 : f32 to vector<16x64xf32>
    %80 = arith.maximumf %78, %79 : vector<16x64xf32>
    %c0_39 = arith.constant 0 : index
    %c0_40 = arith.constant 0 : index
    %81 = vector.load %arg7[%c0_39, %c0_40] : memref<64x32xf32, #tpu.memory_space<vmem>>, vector<64x32xf32>
    %cst_41 = arith.constant dense<0.000000e+00> : vector<16x32xf32>
    %82 = tpu.matmul %80, %81, %cst_41 {dimension_numbers = #tpu.dot_dimension_numbers<[1], [0], [0], [1], [0, 0, 1, 1], [], []>} : vector<16x64xf32>, vector<64x32xf32>, vector<16x32xf32> -> vector<16x32xf32>
    %83 = vector.broadcast %6 : vector<1x32xf32> to vector<16x32xf32>
    %84 = arith.addf %82, %83 : vector<16x32xf32>
    %85 = arith.addf %74, %84 : vector<16x32xf32>
    %cst_42 = arith.constant dense<0.000000e+00> : vector<16xf32>
    %86 = vector.multi_reduction <add>, %85, %cst_42 [1] : vector<16x32xf32> to vector<16xf32>
    %87 = vector.shape_cast %86 : vector<16xf32> to vector<16x1xf32>
    %cst_43 = arith.constant 3.200000e+01 : f32
    %88 = vector.broadcast %cst_43 : f32 to vector<16x1xf32>
    %89 = arith.divf %87, %88 : vector<16x1xf32>
    %90 = vector.broadcast %89 : vector<16x1xf32> to vector<16x32xf32>
    %91 = arith.subf %85, %90 : vector<16x32xf32>
    %92 = arith.mulf %91, %91 : vector<16x32xf32>
    %cst_44 = arith.constant dense<0.000000e+00> : vector<16xf32>
    %93 = vector.multi_reduction <add>, %92, %cst_44 [1] : vector<16x32xf32> to vector<16xf32>
    %94 = vector.shape_cast %93 : vector<16xf32> to vector<16x1xf32>
    %cst_45 = arith.constant 3.200000e+01 : f32
    %95 = vector.broadcast %cst_45 : f32 to vector<16x1xf32>
    %96 = arith.divf %94, %95 : vector<16x1xf32>
    %97 = vector.broadcast %89 : vector<16x1xf32> to vector<16x32xf32>
    %98 = arith.subf %85, %97 : vector<16x32xf32>
    %cst_46 = arith.constant 9.99999974E-6 : f32
    %99 = vector.broadcast %cst_46 : f32 to vector<16x1xf32>
    %100 = arith.addf %96, %99 : vector<16x1xf32>
    %101 = math.rsqrt %100 : vector<16x1xf32>
    %102 = vector.broadcast %101 : vector<16x1xf32> to vector<16x32xf32>
    %103 = arith.mulf %98, %102 : vector<16x32xf32>
    %104 = vector.broadcast %7 : vector<1x32xf32> to vector<16x32xf32>
    %105 = arith.mulf %103, %104 : vector<16x32xf32>
    %106 = vector.broadcast %8 : vector<1x32xf32> to vector<16x32xf32>
    %107 = arith.addf %105, %106 : vector<16x32xf32>
    %c0_47 = arith.constant 0 : index
    %c0_48 = arith.constant 0 : index
    %108 = vector.load %arg8[%c0_47, %c0_48] : memref<32x128xf32, #tpu.memory_space<vmem>>, vector<32x128xf32>
    %cst_49 = arith.constant dense<0.000000e+00> : vector<16x128xf32>
    %109 = tpu.matmul %107, %108, %cst_49 {dimension_numbers = #tpu.dot_dimension_numbers<[1], [0], [0], [1], [0, 0, 1, 1], [], []>} : vector<16x32xf32>, vector<32x128xf32>, vector<16x128xf32> -> vector<16x128xf32>
    %110 = vector.broadcast %9 : vector<1x128xf32> to vector<16x128xf32>
    %111 = arith.addf %109, %110 : vector<16x128xf32>
    %c0_50 = arith.constant 0 : index
    %c0_51 = arith.constant 0 : index
    %112 = vector.load %arg10[%c0_50, %c0_51] : memref<16x128xf32, #tpu.memory_space<vmem>>, vector<16x128xf32>
    tpu.vector_store %arg10[%c0_50, %c0_51], %111 {strides = array<i32>} : memref<16x128xf32, #tpu.memory_space<vmem>>, vector<16x128xf32>,
    return
  }
}

</mosaic_0001>

<llo_original>
// kernel: tpu_custom_call.1
$region0: #{tpu_custom_call.1}
  #allocation0 [shape = 'u32[]', space=smem, size = 0x4, offset = 0x4, fixed_abs, tag = 'smem constant byte address 0x4 - core index']
  #allocation1 [shape = 'u32[144,128]{1,0:T(1,128)}', space=vmem, size = 0x12000, scoped, tag = 'internal scratch']
  %s0 = inlined_call_operand.hbm [shape: f32[16,16], index: 0, kind: input, shape index: {}]
  %s1 = inlined_call_operand.hbm [shape: f32[16,32], index: 1, kind: input, shape index: {}]
  %s2 = inlined_call_operand.hbm [shape: f32[8,8], index: 2, kind: input, shape index: {}]
  %s3 = inlined_call_operand.hbm [shape: f32[16,32], index: 3, kind: input, shape index: {}]
  %s4 = inlined_call_operand.vmem [shape: f32[32,96], index: 4, kind: input, shape index: {}]
  %s5 = inlined_call_operand.vmem [shape: f32[32,32], index: 5, kind: input, shape index: {}]
  %s6 = inlined_call_operand.vmem [shape: f32[32,64], index: 6, kind: input, shape index: {}]
  %s7 = inlined_call_operand.vmem [shape: f32[64,32], index: 7, kind: input, shape index: {}]
  %s8 = inlined_call_operand.hbm [shape: f32[32,128], index: 8, kind: input, shape index: {}]
  %s9 = inlined_call_operand.vmem [shape: f32[10,128], index: 9, kind: input, shape index: {}]
  %s10 = inlined_call_operand.hbm [shape: f32[16,128], index: 10, kind: output, shape index: {}]
  %s11 = sld [smem:[#allocation0]]
  $region70: #{tpu_custom_call.1} parent=0
    _
  %s13 = ssub.s32 1, %s11
  %s14 = scalar_select 0, %s13, %s11
  $region1: #{tpu_custom_call.1} parent=0
    #allocation2 [shape = 'u8[8192]{0}', space=vmem, size = 0x2000, scoped, tag = 'input window, operand 0, single buffered']
    #allocation3 [shape = 's32[1]{0}', space=sflag, size = 0x4, scoped, tag = 'scoped memory for tpu_custom_call.1']
    #allocation4 [shape = 's32[1]{0}', space=sflag, size = 0x4, scoped, tag = 'scoped memory for tpu_custom_call.1']
    #allocation5 [shape = 'u8[8192]{0}', space=vmem, size = 0x2000, scoped, tag = 'input window, operand 1, single buffered']
    #allocation6 [shape = 's32[1]{0}', space=sflag, size = 0x4, scoped, tag = 'scoped memory for tpu_custom_call.1']
    #allocation7 [shape = 'u8[4096]{0}', space=vmem, size = 0x1000, scoped, tag = 'input window, operand 2, single buffered']
    #allocation8 [shape = 'u8[8192]{0}', space=vmem, size = 0x2000, scoped, tag = 'input window, operand 3, single buffered']
    #allocation9 [shape = 's32[1]{0}', space=sflag, size = 0x4, scoped, tag = 'scoped memory for tpu_custom_call.1']
    #allocation10 [shape = 'u8[16384]{0}', space=vmem, size = 0x4000, scoped, tag = 'input window, operand 8, single buffered']
    #allocation11 [shape = 'u8[8192]{0}', space=vmem, size = 0x2000, scoped, tag = 'output window, operand 0, single buffered']
    %15 = vsyncpa [#allocation3], 0
    %16 = vsyncpa [#allocation6], 0
    %17 = vsyncpa [#allocation9], 0
    %18 = vsyncpa [#allocation4], 0
    // Predicated region
    $region2: #{tpu_custom_call.1} parent=1 // pred_check
      _
    $region3: #{tpu_custom_call.1} parent=1 // pred_check_branch
      %20 = sbr.rel (0) target = $region5
    $region4: #{tpu_custom_call.1} parent=1 // pred_region
      %s22 = ssub.s32 256, 256
      %23 = vsyncadd [#allocation3], %s22
      %s24 = sshll.u32 [#allocation2], 4
      %s25 = int_to_ptr.vmem [resolvable:$true] %s24
      %30 = dma.hbm_to_vmem [thread:$0]  %s0, 256, %s25, [#allocation3], 128, 128, 8
    $region5: #{tpu_custom_call.1} parent=1 // pred_fallthru
      _
    // Predicated region
    $region6: #{tpu_custom_call.1} parent=1 // pred_check
      _
    $region7: #{tpu_custom_call.1} parent=1 // pred_check_branch
      %32 = sbr.rel (0) target = $region9
    $region8: #{tpu_custom_call.1} parent=1 // pred_region
      %s34 = ssub.s32 256, 256
      %35 = vsyncadd [#allocation6], %s34
      %s36 = sshll.u32 [#allocation5], 4
      %s37 = int_to_ptr.vmem [resolvable:$true] %s36
      %42 = dma.hbm_to_vmem [thread:$0]  %s1, 256, %s37, [#allocation6], 128, 128, 8
    $region9: #{tpu_custom_call.1} parent=1 // pred_fallthru
      _
    // Predicated region
    $region10: #{tpu_custom_call.1} parent=1 // pred_check
      _
    $region11: #{tpu_custom_call.1} parent=1 // pred_check_branch
      %44 = sbr.rel (0) target = $region13
    $region12: #{tpu_custom_call.1} parent=1 // pred_region
      %s46 = ssub.s32 128, 128
      %47 = vsyncadd [#allocation6], %s46
      %s49 = sshll.u32 [#allocation7], 4
      %s50 = int_to_ptr.vmem [resolvable:$true] %s49
      %52 = dma.hbm_to_vmem [thread:$0]  %s2, 128, %s50, [#allocation6]
    $region13: #{tpu_custom_call.1} parent=1 // pred_fallthru
      _
    // Predicated region
    $region14: #{tpu_custom_call.1} parent=1 // pred_check
      _
    $region15: #{tpu_custom_call.1} parent=1 // pred_check_branch
      %54 = sbr.rel (0) target = $region17
    $region16: #{tpu_custom_call.1} parent=1 // pred_region
      %s56 = ssub.s32 256, 256
      %57 = vsyncadd [#allocation9], %s56
      %s58 = sshll.u32 [#allocation8], 4
      %s59 = int_to_ptr.vmem [resolvable:$true] %s58
      %64 = dma.hbm_to_vmem [thread:$0]  %s3, 256, %s59, [#allocation9], 128, 128, 8
    $region17: #{tpu_custom_call.1} parent=1 // pred_fallthru
      _
    // Predicated region
    $region18: #{tpu_custom_call.1} parent=1 // pred_check
      _
    $region19: #{tpu_custom_call.1} parent=1 // pred_check_branch
      %66 = sbr.rel (0) target = $region21
    $region20: #{tpu_custom_call.1} parent=1 // pred_region
      _
    $region21: #{tpu_custom_call.1} parent=1 // pred_fallthru
      _
    // Predicated region
    $region22: #{tpu_custom_call.1} parent=1 // pred_check
      _
    $region23: #{tpu_custom_call.1} parent=1 // pred_check_branch
      %68 = sbr.rel (0) target = $region25
    $region24: #{tpu_custom_call.1} parent=1 // pred_region
      _
    $region25: #{tpu_custom_call.1} parent=1 // pred_fallthru
      _
    // Predicated region
    $region26: #{tpu_custom_call.1} parent=1 // pred_check
      _
    $region27: #{tpu_custom_call.1} parent=1 // pred_check_branch
      %70 = sbr.rel (0) target = $region29
    $region28: #{tpu_custom_call.1} parent=1 // pred_region
      _
    $region29: #{tpu_custom_call.1} parent=1 // pred_fallthru
      _
    // Predicated region
    $region30: #{tpu_custom_call.1} parent=1 // pred_check
      _
    $region31: #{tpu_custom_call.1} parent=1 // pred_check_branch
      %72 = sbr.rel (0) target = $region33
    $region32: #{tpu_custom_call.1} parent=1 // pred_region
      _
    $region33: #{tpu_custom_call.1} parent=1 // pred_fallthru
      _
    // Predicated region
    $region34: #{tpu_custom_call.1} parent=1 // pred_check
      _
    $region35: #{tpu_custom_call.1} parent=1 // pred_check_branch
      %74 = sbr.rel (0) target = $region37
    $region36: #{tpu_custom_call.1} parent=1 // pred_region
      %s76 = ssub.s32 512, 512
      %77 = vsyncadd [#allocation9], %s76
      %s78 = sshll.u32 [#allocation10], 4
      %s79 = int_to_ptr.vmem [resolvable:$true] %s78
      %84 = dma.hbm_to_vmem [thread:$0]  %s8, 512, %s79, [#allocation9], 128, 128, 8
    $region37: #{tpu_custom_call.1} parent=1 // pred_fallthru
      _
    // Predicated region
    $region38: #{tpu_custom_call.1} parent=1 // pred_check
      _
    $region39: #{tpu_custom_call.1} parent=1 // pred_check_branch
      %86 = sbr.rel (0) target = $region41
    $region40: #{tpu_custom_call.1} parent=1 // pred_region
      _
    $region41: #{tpu_custom_call.1} parent=1 // pred_fallthru
      _
    // Predicated region
    $region42: #{tpu_custom_call.1} parent=1 // pred_check
      _
    $region43: #{tpu_custom_call.1} parent=1 // pred_check_branch
      %88 = sbr.rel (0) target = $region45
    $region44: #{tpu_custom_call.1} parent=1 // pred_region
      %89 = dma.done [#allocation3], 256
    $region45: #{tpu_custom_call.1} parent=1 // pred_fallthru
      _
    // Predicated region
    $region46: #{tpu_custom_call.1} parent=1 // pred_check
      _
    $region47: #{tpu_custom_call.1} parent=1 // pred_check_branch
      %91 = sbr.rel (0) target = $region49
    $region48: #{tpu_custom_call.1} parent=1 // pred_region
      %92 = dma.done [#allocation6], 256
    $region49: #{tpu_custom_call.1} parent=1 // pred_fallthru
      _
    // Predicated region
    $region50: #{tpu_custom_call.1} parent=1 // pred_check
      _
    $region51: #{tpu_custom_call.1} parent=1 // pred_check_branch
      %94 = sbr.rel (0) target = $region53
    $region52: #{tpu_custom_call.1} parent=1 // pred_region
      %95 = dma.done [#allocation6], 128
    $region53: #{tpu_custom_call.1} parent=1 // pred_fallthru
      _
    // Predicated region
    $region54: #{tpu_custom_call.1} parent=1 // pred_check
      _
    $region55: #{tpu_custom_call.1} parent=1 // pred_check_branch
      %97 = sbr.rel (0) target = $region57
    $region56: #{tpu_custom_call.1} parent=1 // pred_region
      %98 = dma.done [#allocation9], 256
    $region57: #{tpu_custom_call.1} parent=1 // pred_fallthru
      _
    // Predicated region
    $region58: #{tpu_custom_call.1} parent=1 // pred_check
      _
    $region59: #{tpu_custom_call.1} parent=1 // pred_check_branch
      %100 = sbr.rel (0) target = $region61
    $region60: #{tpu_custom_call.1} parent=1 // pred_region
      %101 = dma.done [#allocation9], 512
    $region61: #{tpu_custom_call.1} parent=1 // pred_fallthru
      _
    %v102 = vld [vmem:[%s9] sm:$0x1]
    %v103 = vld [vmem:[%s9 + $0x1] sm:$0x1]
    %v104 = vld [vmem:[%s9 + $0x2] sm:$0x1]
    %v105 = vld [vmem:[%s9 + $0x3] sm:$0x1]
    %v106 = vld [vmem:[%s9 + $0x4] sm:$0x1]
    %v107 = vld [vmem:[%s9 + $0x5] sm:$0x1]
    %v108 = vld [vmem:[%s9 + $0x6] sm:$0x1]
    %v109 = vld [vmem:[%s9 + $0x7] sm:$0x1]
    %v110 = vld [vmem:[%s9 + $0x8] sm:$0x1]
    %v111 = vld [vmem:[%s9 + $0x9] sm:$0x1]
    %v112 = vld [vmem:[#allocation2] sm:$0xff]
    %v113 = vld [vmem:[#allocation2 + $0x8] sm:$0xff]
    %v114 = vld [vmem:[#allocation8] sm:$0xff]
    %v115 = vld [vmem:[#allocation8 + $0x8] sm:$0xff]
    %v116 = vlaneseq
    %v117 = vshrl.u32 %v116, 7
    %v118 = vsub.s32 0, %v117
    %v119 = vrot.slane %v102, %v118
    %vm120 = vcmask 130048
    %v122 = vsel %vm120, %v112, 0
    %v125 = vsel %vm120, %v113, 0
    %127 = vmatprep.subr.mxu0 0.0
    %128 = vmatpush1.msra.mxu0 %v114
    %129 = vmatprep.subr.mxu0 0.0
    %130 = vmatpush1.msra.mxu0 %v115
    %131 = vmatprep.subr.mxu0 0.0
    %132 = vmatpush1.msra.mxu0 0.0
    %133 = vmatprep.subr.mxu0 0.0
    %134 = vmatpush1.msra.mxu0 0.0
    %135 = vmatprep.subr.mxu0 0.0
    %136 = vmatpush1.msra.mxu0 0.0
    %137 = vmatprep.subr.mxu0 0.0
    %138 = vmatpush1.msra.mxu0 0.0
    %139 = vmatprep.subr.mxu0 0.0
    %140 = vmatpush1.msra.mxu0 0.0
    %141 = vmatprep.subr.mxu0 0.0
    %142 = vmatpush1.msra.mxu0 0.0
    %143 = vmatprep.subr.mxu0 0.0
    %144 = vmatpush1.msra.mxu0 0.0
    %145 = vmatprep.subr.mxu0 0.0
    %146 = vmatpush1.msra.mxu0 0.0
    %147 = vmatprep.subr.mxu0 0.0
    %148 = vmatpush1.msra.mxu0 0.0
    %149 = vmatprep.subr.mxu0 0.0
    %150 = vmatpush1.msra.mxu0 0.0
    %151 = vmatprep.subr.mxu0 0.0
    %152 = vmatpush1.msra.mxu0 0.0
    %153 = vmatprep.subr.mxu0 0.0
    %154 = vmatpush1.msra.mxu0 0.0
    %155 = vmatprep.subr.mxu0 0.0
    %156 = vmatpush1.msra.mxu0 0.0
    %157 = vmatprep.subr.mxu0 0.0
    %158 = vmatpush1.msra.mxu0 0.0
    %159 = vmatprep.subr.mxu0 0.0
    %160 = vmatpush1.msra.mxu0 0.0
    %161 = vmatprep.subr.mxu0 0.0
    %162 = vmatpush1.msra.mxu0 0.0
    %163 = vmatprep.subr.mxu0 0.0
    %164 = vmatpush1.msra.mxu0 0.0
    %165 = vmatprep.subr.mxu0 0.0
    %166 = vmatpush1.msra.mxu0 0.0
    %167 = vmatprep.subr.mxu0 0.0
    %168 = vmatpush1.msra.mxu0 0.0
    %169 = vmatprep.subr.mxu0 0.0
    %170 = vmatpush1.msra.mxu0 0.0
    %171 = vmatprep.subr.mxu0 0.0
    %172 = vmatpush1.msra.mxu0 0.0
    %173 = vmatprep.subr.mxu0 0.0
    %174 = vmatpush1.msra.mxu0 0.0
    %175 = vmatprep.subr.mxu0 0.0
    %176 = vmatpush1.msra.mxu0 0.0
    %177 = vmatprep.subr.mxu0 0.0
    %178 = vmatpush1.msra.mxu0 0.0
    %179 = vmatprep.subr.mxu0 0.0
    %180 = vmatpush1.msra.mxu0 0.0
    %181 = vmatprep.subr.mxu0 0.0
    %182 = vmatpush1.msra.mxu0 0.0
    %183 = vmatprep.subr.mxu0 0.0
    %184 = vmatpush1.msra.mxu0 0.0
    %185 = vmatprep.subr.mxu0 0.0
    %186 = vmatpush1.msra.mxu0 0.0
    %187 = vmatprep.subr.mxu0 0.0
    %188 = vmatpush1.msra.mxu0 0.0
    %189 = vmatprep.subr.mxu0 0.0
    %190 = vmatpush1.msra.mxu0 0.0
    %191 = vmatprep.mubr.f32.mxu0 0.0
    %192 = vmatmul.mubr.f32.gmra.mrb[0].mxu0 %v122
    %v193 = vpop.f32.mrb[0].mxu0
    %v194 = vadd.f32 %v119, %v193
    %v195 = vpop.f32.mrb[0].mxu0
    %196 = vmatprep.mubr.f32.mxu0 0.0
    %197 = vmatmul.mubr.f32.gmra.mrb[0].mxu0 %v125
    %v198 = vpop.f32.mrb[0].mxu0
    %v199 = vadd.f32 %v119, %v198
    %v200 = vpop.f32.mrb[0].mxu0
    %201 = vdwg.mxu0
    %v202 = vmul.f32 %v194, 5.656854
    %v203 = vmul.f32 %v199, 5.656854
    %v204 = vld [vmem:[#allocation5] sm:$0xff]
    %v205 = vld [vmem:[#allocation5 + $0x8] sm:$0xff]
    %v206 = vadd.f32 %v202, %v204
    %v207 = vadd.f32 %v203, %v205
    %v208 = vld [vmem:[%s4] sm:$0xff]
    %v209 = vld [vmem:[%s4 + $0x8] sm:$0xff]
    %v210 = vld [vmem:[%s4 + $0x10] sm:$0xff]
    %v211 = vld [vmem:[%s4 + $0x18] sm:$0xff]
    %v212 = vlaneseq
    %v213 = vshrl.u32 %v212, 7
    %v214 = vsub.s32 0, %v213
    %v215 = vrot.slane %v103, %v214
    %vm216 = vcmask 261120
    %v218 = vsel %vm216, %v206, 0
    %v221 = vsel %vm216, %v207, 0
    %223 = vmatprep.subr.mxu0 0.0
    %224 = vmatpush1.msra.mxu0 %v208
    %225 = vmatprep.subr.mxu0 0.0
    %226 = vmatpush1.msra.mxu0 %v209
    %227 = vmatprep.subr.mxu0 0.0
    %228 = vmatpush1.msra.mxu0 %v210
    %229 = vmatprep.subr.mxu0 0.0
    %230 = vmatpush1.msra.mxu0 %v211
    %231 = vmatprep.subr.mxu0 0.0
    %232 = vmatpush1.msra.mxu0 0.0
    %233 = vmatprep.subr.mxu0 0.0
    %234 = vmatpush1.msra.mxu0 0.0
    %235 = vmatprep.subr.mxu0 0.0
    %236 = vmatpush1.msra.mxu0 0.0
    %237 = vmatprep.subr.mxu0 0.0
    %238 = vmatpush1.msra.mxu0 0.0
    %239 = vmatprep.subr.mxu0 0.0
    %240 = vmatpush1.msra.mxu0 0.0
    %241 = vmatprep.subr.mxu0 0.0
    %242 = vmatpush1.msra.mxu0 0.0
    %243 = vmatprep.subr.mxu0 0.0
    %244 = vmatpush1.msra.mxu0 0.0
    %245 = vmatprep.subr.mxu0 0.0
    %246 = vmatpush1.msra.mxu0 0.0
    %247 = vmatprep.subr.mxu0 0.0
    %248 = vmatpush1.msra.mxu0 0.0
    %249 = vmatprep.subr.mxu0 0.0
    %250 = vmatpush1.msra.mxu0 0.0
    %251 = vmatprep.subr.mxu0 0.0
    %252 = vmatpush1.msra.mxu0 0.0
    %253 = vmatprep.subr.mxu0 0.0
    %254 = vmatpush1.msra.mxu0 0.0
    %255 = vmatprep.subr.mxu0 0.0
    %256 = vmatpush1.msra.mxu0 0.0
    %257 = vmatprep.subr.mxu0 0.0
    %258 = vmatpush1.msra.mxu0 0.0
    %259 = vmatprep.subr.mxu0 0.0
    %260 = vmatpush1.msra.mxu0 0.0
    %261 = vmatprep.subr.mxu0 0.0
    %262 = vmatpush1.msra.mxu0 0.0
    %263 = vmatprep.subr.mxu0 0.0
    %264 = vmatpush1.msra.mxu0 0.0
    %265 = vmatprep.subr.mxu0 0.0
    %266 = vmatpush1.msra.mxu0 0.0
    %267 = vmatprep.subr.mxu0 0.0
    %268 = vmatpush1.msra.mxu0 0.0
    %269 = vmatprep.subr.mxu0 0.0
    %270 = vmatpush1.msra.mxu0 0.0
    %271 = vmatprep.subr.mxu0 0.0
    %272 = vmatpush1.msra.mxu0 0.0
    %273 = vmatprep.subr.mxu0 0.0
    %274 = vmatpush1.msra.mxu0 0.0
    %275 = vmatprep.subr.mxu0 0.0
    %276 = vmatpush1.msra.mxu0 0.0
    %277 = vmatprep.subr.mxu0 0.0
    %278 = vmatpush1.msra.mxu0 0.0
    %279 = vmatprep.subr.mxu0 0.0
    %280 = vmatpush1.msra.mxu0 0.0
    %281 = vmatprep.subr.mxu0 0.0
    %282 = vmatpush1.msra.mxu0 0.0
    %283 = vmatprep.subr.mxu0 0.0
    %284 = vmatpush1.msra.mxu0 0.0
    %285 = vmatprep.subr.mxu0 0.0
    %286 = vmatpush1.msra.mxu0 0.0
    %287 = vmatprep.mubr.f32.mxu0 0.0
    %288 = vmatmul.mubr.f32.gmra.mrb[0].mxu0 %v218
    %v289 = vpop.f32.mrb[0].mxu0
    %v290 = vadd.f32 %v215, %v289
    %v291 = vpop.f32.mrb[0].mxu0
    %292 = vmatprep.mubr.f32.mxu0 0.0
    %293 = vmatmul.mubr.f32.gmra.mrb[0].mxu0 %v221
    %v294 = vpop.f32.mrb[0].mxu0
    %v295 = vadd.f32 %v215, %v294
    %v296 = vpop.f32.mrb[0].mxu0
    %297 = vdwg.mxu0
    %299 = vrot.lane.b32.xlu0 %v290, 96
    %v300 = vpop.permute.xlu0 %299
    %v301 = vsel %vm216, %v290, 0
    %v303 = vsel %vm216, %v300, 0
    %305 = vmatprep.subr.mxu0 0.0
    %306 = vmatpush1.xpose.msra.mxu0 %v303
    %307 = vmatprep.subr.mxu0 0.0
    %308 = vmatpush1.xpose.msra.mxu0 0.0
    %309 = vmatprep.subr.mxu0 0.0
    %310 = vmatpush1.xpose.msra.mxu0 0.0
    %311 = vmatprep.subr.mxu0 0.0
    %312 = vmatpush1.xpose.msra.mxu0 0.0
    %313 = vmatprep.subr.mxu0 0.0
    %314 = vmatpush1.xpose.msra.mxu0 0.0
    %315 = vmatprep.subr.mxu0 0.0
    %316 = vmatpush1.xpose.msra.mxu0 0.0
    %317 = vmatprep.subr.mxu0 0.0
    %318 = vmatpush1.xpose.msra.mxu0 0.0
    %319 = vmatprep.subr.mxu0 0.0
    %320 = vmatpush1.xpose.msra.mxu0 0.0
    %321 = vmatprep.subr.mxu0 0.0
    %322 = vmatpush1.xpose.msra.mxu0 0.0
    %323 = vmatprep.subr.mxu0 0.0
    %324 = vmatpush1.xpose.msra.mxu0 0.0
    %325 = vmatprep.subr.mxu0 0.0
    %326 = vmatpush1.xpose.msra.mxu0 0.0
    %327 = vmatprep.subr.mxu0 0.0
    %328 = vmatpush1.xpose.msra.mxu0 0.0
    %329 = vmatprep.subr.mxu0 0.0
    %330 = vmatpush1.xpose.msra.mxu0 0.0
    %331 = vmatprep.subr.mxu0 0.0
    %332 = vmatpush1.xpose.msra.mxu0 0.0
    %333 = vmatprep.subr.mxu0 0.0
    %334 = vmatpush1.xpose.msra.mxu0 0.0
    %335 = vmatprep.subr.mxu0 0.0
    %336 = vmatpush1.xpose.msra.mxu0 0.0
    %337 = vmatprep.subr.mxu0 0.0
    %338 = vmatpush1.xpose.msra.mxu0 0.0
    %339 = vmatprep.subr.mxu0 0.0
    %340 = vmatpush1.xpose.msra.mxu0 0.0
    %341 = vmatprep.subr.mxu0 0.0
    %342 = vmatpush1.xpose.msra.mxu0 0.0
    %343 = vmatprep.subr.mxu0 0.0
    %344 = vmatpush1.xpose.msra.mxu0 0.0
    %345 = vmatprep.subr.mxu0 0.0
    %346 = vmatpush1.xpose.msra.mxu0 0.0
    %347 = vmatprep.subr.mxu0 0.0
    %348 = vmatpush1.xpose.msra.mxu0 0.0
    %349 = vmatprep.subr.mxu0 0.0
    %350 = vmatpush1.xpose.msra.mxu0 0.0
    %351 = vmatprep.subr.mxu0 0.0
    %352 = vmatpush1.xpose.msra.mxu0 0.0
    %353 = vmatprep.subr.mxu0 0.0
    %354 = vmatpush1.xpose.msra.mxu0 0.0
    %355 = vmatprep.subr.mxu0 0.0
    %356 = vmatpush1.xpose.msra.mxu0 0.0
    %357 = vmatprep.subr.mxu0 0.0
    %358 = vmatpush1.xpose.msra.mxu0 0.0
    %359 = vmatprep.subr.mxu0 0.0
    %360 = vmatpush1.xpose.msra.mxu0 0.0
    %361 = vmatprep.subr.mxu0 0.0
    %362 = vmatpush1.xpose.msra.mxu0 0.0
    %363 = vmatprep.subr.mxu0 0.0
    %364 = vmatpush1.xpose.msra.mxu0 0.0
    %365 = vmatprep.subr.mxu0 0.0
    %366 = vmatpush1.xpose.msra.mxu0 0.0
    %367 = vmatprep.subr.mxu0 0.0
    %368 = vmatpush1.xpose.msra.mxu0 0.0
    %369 = vmatprep.mubr.f32.mxu0 0.0
    %370 = vmatmul.mubr.f32.gmra.mrb[0].mxu0 %v301
    %v371 = vpop.f32.mrb[0].mxu0
    %v372 = vadd.f32 0.0, %v371
    %v373 = vpop.f32.mrb[0].mxu0
    %374 = vdwg.mxu0
    %376 = vrot.lane.b32.xlu0 %v295, 96
    %v377 = vpop.permute.xlu0 %376
    %v378 = vsel %vm216, %v295, 0
    %v380 = vsel %vm216, %v377, 0
    %382 = vmatprep.subr.mxu0 0.0
    %383 = vmatpush1.xpose.msra.mxu0 %v380
    %384 = vmatprep.subr.mxu0 0.0
    %385 = vmatpush1.xpose.msra.mxu0 0.0
    %386 = vmatprep.subr.mxu0 0.0
    %387 = vmatpush1.xpose.msra.mxu0 0.0
    %388 = vmatprep.subr.mxu0 0.0
    %389 = vmatpush1.xpose.msra.mxu0 0.0
    %390 = vmatprep.subr.mxu0 0.0
    %391 = vmatpush1.xpose.msra.mxu0 0.0
    %392 = vmatprep.subr.mxu0 0.0
    %393 = vmatpush1.xpose.msra.mxu0 0.0
    %394 = vmatprep.subr.mxu0 0.0
    %395 = vmatpush1.xpose.msra.mxu0 0.0
    %396 = vmatprep.subr.mxu0 0.0
    %397 = vmatpush1.xpose.msra.mxu0 0.0
    %398 = vmatprep.subr.mxu0 0.0
    %399 = vmatpush1.xpose.msra.mxu0 0.0
    %400 = vmatprep.subr.mxu0 0.0
    %401 = vmatpush1.xpose.msra.mxu0 0.0
    %402 = vmatprep.subr.mxu0 0.0
    %403 = vmatpush1.xpose.msra.mxu0 0.0
    %404 = vmatprep.subr.mxu0 0.0
    %405 = vmatpush1.xpose.msra.mxu0 0.0
    %406 = vmatprep.subr.mxu0 0.0
    %407 = vmatpush1.xpose.msra.mxu0 0.0
    %408 = vmatprep.subr.mxu0 0.0
    %409 = vmatpush1.xpose.msra.mxu0 0.0
    %410 = vmatprep.subr.mxu0 0.0
    %411 = vmatpush1.xpose.msra.mxu0 0.0
    %412 = vmatprep.subr.mxu0 0.0
    %413 = vmatpush1.xpose.msra.mxu0 0.0
    %414 = vmatprep.subr.mxu0 0.0
    %415 = vmatpush1.xpose.msra.mxu0 0.0
    %416 = vmatprep.subr.mxu0 0.0
    %417 = vmatpush1.xpose.msra.mxu0 0.0
    %418 = vmatprep.subr.mxu0 0.0
    %419 = vmatpush1.xpose.msra.mxu0 0.0
    %420 = vmatprep.subr.mxu0 0.0
    %421 = vmatpush1.xpose.msra.mxu0 0.0
    %422 = vmatprep.subr.mxu0 0.0
    %423 = vmatpush1.xpose.msra.mxu0 0.0
    %424 = vmatprep.subr.mxu0 0.0
    %425 = vmatpush1.xpose.msra.mxu0 0.0
    %426 = vmatprep.subr.mxu0 0.0
    %427 = vmatpush1.xpose.msra.mxu0 0.0
    %428 = vmatprep.subr.mxu0 0.0
    %429 = vmatpush1.xpose.msra.mxu0 0.0
    %430 = vmatprep.subr.mxu0 0.0
    %431 = vmatpush1.xpose.msra.mxu0 0.0
    %432 = vmatprep.subr.mxu0 0.0
    %433 = vmatpush1.xpose.msra.mxu0 0.0
    %434 = vmatprep.subr.mxu0 0.0
    %435 = vmatpush1.xpose.msra.mxu0 0.0
    %436 = vmatprep.subr.mxu0 0.0
    %437 = vmatpush1.xpose.msra.mxu0 0.0
    %438 = vmatprep.subr.mxu0 0.0
    %439 = vmatpush1.xpose.msra.mxu0 0.0
    %440 = vmatprep.subr.mxu0 0.0
    %441 = vmatpush1.xpose.msra.mxu0 0.0
    %442 = vmatprep.subr.mxu0 0.0
    %443 = vmatpush1.xpose.msra.mxu0 0.0
    %444 = vmatprep.subr.mxu0 0.0
    %445 = vmatpush1.xpose.msra.mxu0 0.0
    %446 = vmatprep.mubr.f32.mxu0 0.0
    %447 = vmatmul.mubr.f32.gmra.mrb[0].mxu0 %v378
    %v448 = vpop.f32.mrb[0].mxu0
    %v449 = vadd.f32 0.0, %v448
    %v450 = vpop.f32.mrb[0].mxu0
    %451 = vdwg.mxu0
    %v452 = vmul.f32 %v372, 0.17677669
    %v453 = vmul.f32 %v449, 0.17677669
    %v454 = vld [vmem:[#allocation7] sm:$0xff]
    %v455 = vadd.f32 %v452, %v454
    %v456 = vadd.f32 %v453, %v454
    %vm457 = vcmask 64512
    %v458 = vsel %vm457, %v455, -inf
    %459 = vmax.xlane.f32.xlu0 %v458
    %v460 = vpop.xlane.xlu0 %459
    %v461 = vsel %vm457, %v456, -inf
    %462 = vmax.xlane.f32.xlu0 %v461
    %v463 = vpop.xlane.xlu0 %462
    %v464 = vsub.f32 %v455, %v460
    %v465 = vsub.f32 %v456, %v463
    %v466 = vmul.f32 %v464, 1.442695
    %v467 = vpow.pop %v466
    %v468 = vmul.f32 %v465, 1.442695
    %v469 = vpow.pop %v468
    %v470 = vsel %vm457, %v467, 0.0
    %471 = vadd.xlane.f32.xlu0 %v470
    %v472 = vpop.xlane.xlu0 %471
    %v473 = vsel %vm457, %v469, 0.0
    %474 = vadd.xlane.f32.xlu0 %v473
    %v475 = vpop.xlane.xlu0 %474
    %v476 = vrcp.pop %v472
    %v477 = vrcp.pop %v475
    %v478 = vmul.f32 %v467, %v476
    %v479 = vmul.f32 %v469, %v477
    %480 = vrot.lane.b32.xlu0 %v290, 64
    %v481 = vpop.permute.xlu0 %480
    %v484 = vsel %vm457, %v478, 0
    %486 = vmatprep.subr.mxu0 0.0
    %487 = vmatpush1.msra.mxu0 %v481
    %488 = vmatprep.subr.mxu0 0.0
    %489 = vmatpush1.msra.mxu0 0.0
    %490 = vmatprep.subr.mxu0 0.0
    %491 = vmatpush1.msra.mxu0 0.0
    %492 = vmatprep.subr.mxu0 0.0
    %493 = vmatpush1.msra.mxu0 0.0
    %494 = vmatprep.subr.mxu0 0.0
    %495 = vmatpush1.msra.mxu0 0.0
    %496 = vmatprep.subr.mxu0 0.0
    %497 = vmatpush1.msra.mxu0 0.0
    %498 = vmatprep.subr.mxu0 0.0
    %499 = vmatpush1.msra.mxu0 0.0
    %500 = vmatprep.subr.mxu0 0.0
    %501 = vmatpush1.msra.mxu0 0.0
    %502 = vmatprep.subr.mxu0 0.0
    %503 = vmatpush1.msra.mxu0 0.0
    %504 = vmatprep.subr.mxu0 0.0
    %505 = vmatpush1.msra.mxu0 0.0
    %506 = vmatprep.subr.mxu0 0.0
    %507 = vmatpush1.msra.mxu0 0.0
    %508 = vmatprep.subr.mxu0 0.0
    %509 = vmatpush1.msra.mxu0 0.0
    %510 = vmatprep.subr.mxu0 0.0
    %511 = vmatpush1.msra.mxu0 0.0
    %512 = vmatprep.subr.mxu0 0.0
    %513 = vmatpush1.msra.mxu0 0.0
    %514 = vmatprep.subr.mxu0 0.0
    %515 = vmatpush1.msra.mxu0 0.0
    %516 = vmatprep.subr.mxu0 0.0
    %517 = vmatpush1.msra.mxu0 0.0
    %518 = vmatprep.subr.mxu0 0.0
    %519 = vmatpush1.msra.mxu0 0.0
    %520 = vmatprep.subr.mxu0 0.0
    %521 = vmatpush1.msra.mxu0 0.0
    %522 = vmatprep.subr.mxu0 0.0
    %523 = vmatpush1.msra.mxu0 0.0
    %524 = vmatprep.subr.mxu0 0.0
    %525 = vmatpush1.msra.mxu0 0.0
    %526 = vmatprep.subr.mxu0 0.0
    %527 = vmatpush1.msra.mxu0 0.0
    %528 = vmatprep.subr.mxu0 0.0
    %529 = vmatpush1.msra.mxu0 0.0
    %530 = vmatprep.subr.mxu0 0.0
    %531 = vmatpush1.msra.mxu0 0.0
    %532 = vmatprep.subr.mxu0 0.0
    %533 = vmatpush1.msra.mxu0 0.0
    %534 = vmatprep.subr.mxu0 0.0
    %535 = vmatpush1.msra.mxu0 0.0
    %536 = vmatprep.subr.mxu0 0.0
    %537 = vmatpush1.msra.mxu0 0.0
    %538 = vmatprep.subr.mxu0 0.0
    %539 = vmatpush1.msra.mxu0 0.0
    %540 = vmatprep.subr.mxu0 0.0
    %541 = vmatpush1.msra.mxu0 0.0
    %542 = vmatprep.subr.mxu0 0.0
    %543 = vmatpush1.msra.mxu0 0.0
    %544 = vmatprep.subr.mxu0 0.0
    %545 = vmatpush1.msra.mxu0 0.0
    %546 = vmatprep.subr.mxu0 0.0
    %547 = vmatpush1.msra.mxu0 0.0
    %548 = vmatprep.subr.mxu0 0.0
    %549 = vmatpush1.msra.mxu0 0.0
    %550 = vmatprep.mubr.f32.mxu0 0.0
    %551 = vmatmul.mubr.f32.gmra.mrb[0].mxu0 %v484
    %v552 = vpop.f32.mrb[0].mxu0
    %v553 = vadd.f32 0.0, %v552
    %v554 = vpop.f32.mrb[0].mxu0
    %555 = vdwg.mxu0
    %556 = vrot.lane.b32.xlu0 %v295, 64
    %v557 = vpop.permute.xlu0 %556
    %v560 = vsel %vm457, %v479, 0
    %562 = vmatprep.subr.mxu0 0.0
    %563 = vmatpush1.msra.mxu0 %v557
    %564 = vmatprep.subr.mxu0 0.0
    %565 = vmatpush1.msra.mxu0 0.0
    %566 = vmatprep.subr.mxu0 0.0
    %567 = vmatpush1.msra.mxu0 0.0
    %568 = vmatprep.subr.mxu0 0.0
    %569 = vmatpush1.msra.mxu0 0.0
    %570 = vmatprep.subr.mxu0 0.0
    %571 = vmatpush1.msra.mxu0 0.0
    %572 = vmatprep.subr.mxu0 0.0
    %573 = vmatpush1.msra.mxu0 0.0
    %574 = vmatprep.subr.mxu0 0.0
    %575 = vmatpush1.msra.mxu0 0.0
    %576 = vmatprep.subr.mxu0 0.0
    %577 = vmatpush1.msra.mxu0 0.0
    %578 = vmatprep.subr.mxu0 0.0
    %579 = vmatpush1.msra.mxu0 0.0
    %580 = vmatprep.subr.mxu0 0.0
    %581 = vmatpush1.msra.mxu0 0.0
    %582 = vmatprep.subr.mxu0 0.0
    %583 = vmatpush1.msra.mxu0 0.0
    %584 = vmatprep.subr.mxu0 0.0
    %585 = vmatpush1.msra.mxu0 0.0
    %586 = vmatprep.subr.mxu0 0.0
    %587 = vmatpush1.msra.mxu0 0.0
    %588 = vmatprep.subr.mxu0 0.0
    %589 = vmatpush1.msra.mxu0 0.0
    %590 = vmatprep.subr.mxu0 0.0
    %591 = vmatpush1.msra.mxu0 0.0
    %592 = vmatprep.subr.mxu0 0.0
    %593 = vmatpush1.msra.mxu0 0.0
    %594 = vmatprep.subr.mxu0 0.0
    %595 = vmatpush1.msra.mxu0 0.0
    %596 = vmatprep.subr.mxu0 0.0
    %597 = vmatpush1.msra.mxu0 0.0
    %598 = vmatprep.subr.mxu0 0.0
    %599 = vmatpush1.msra.mxu0 0.0
    %600 = vmatprep.subr.mxu0 0.0
    %601 = vmatpush1.msra.mxu0 0.0
    %602 = vmatprep.subr.mxu0 0.0
    %603 = vmatpush1.msra.mxu0 0.0
    %604 = vmatprep.subr.mxu0 0.0
    %605 = vmatpush1.msra.mxu0 0.0
    %606 = vmatprep.subr.mxu0 0.0
    %607 = vmatpush1.msra.mxu0 0.0
    %608 = vmatprep.subr.mxu0 0.0
    %609 = vmatpush1.msra.mxu0 0.0
    %610 = vmatprep.subr.mxu0 0.0
    %611 = vmatpush1.msra.mxu0 0.0
    %612 = vmatprep.subr.mxu0 0.0
    %613 = vmatpush1.msra.mxu0 0.0
    %614 = vmatprep.subr.mxu0 0.0
    %615 = vmatpush1.msra.mxu0 0.0
    %616 = vmatprep.subr.mxu0 0.0
    %617 = vmatpush1.msra.mxu0 0.0
    %618 = vmatprep.subr.mxu0 0.0
    %619 = vmatpush1.msra.mxu0 0.0
    %620 = vmatprep.subr.mxu0 0.0
    %621 = vmatpush1.msra.mxu0 0.0
    %622 = vmatprep.subr.mxu0 0.0
    %623 = vmatpush1.msra.mxu0 0.0
    %624 = vmatprep.subr.mxu0 0.0
    %625 = vmatpush1.msra.mxu0 0.0
    %626 = vmatprep.mubr.f32.mxu0 0.0
    %627 = vmatmul.mubr.f32.gmra.mrb[0].mxu0 %v560
    %v628 = vpop.f32.mrb[0].mxu0
    %v629 = vadd.f32 0.0, %v628
    %v630 = vpop.f32.mrb[0].mxu0
    %631 = vdwg.mxu0
    %v632 = vld [vmem:[%s5] sm:$0xff]
    %v633 = vld [vmem:[%s5 + $0x8] sm:$0xff]
    %v634 = vld [vmem:[%s5 + $0x10] sm:$0xff]
    %v635 = vld [vmem:[%s5 + $0x18] sm:$0xff]
    %v636 = vlaneseq
    %v637 = vshrl.u32 %v636, 7
    %v638 = vsub.s32 0, %v637
    %v639 = vrot.slane %v104, %v638
    %v641 = vsel %vm216, %v553, 0
    %v644 = vsel %vm216, %v629, 0
    %646 = vmatprep.subr.mxu0 0.0
    %647 = vmatpush1.msra.mxu0 %v632
    %648 = vmatprep.subr.mxu0 0.0
    %649 = vmatpush1.msra.mxu0 %v633
    %650 = vmatprep.subr.mxu0 0.0
    %651 = vmatpush1.msra.mxu0 %v634
    %652 = vmatprep.subr.mxu0 0.0
    %653 = vmatpush1.msra.mxu0 %v635
    %654 = vmatprep.subr.mxu0 0.0
    %655 = vmatpush1.msra.mxu0 0.0
    %656 = vmatprep.subr.mxu0 0.0
    %657 = vmatpush1.msra.mxu0 0.0
    %658 = vmatprep.subr.mxu0 0.0
    %659 = vmatpush1.msra.mxu0 0.0
    %660 = vmatprep.subr.mxu0 0.0
    %661 = vmatpush1.msra.mxu0 0.0
    %662 = vmatprep.subr.mxu0 0.0
    %663 = vmatpush1.msra.mxu0 0.0
    %664 = vmatprep.subr.mxu0 0.0
    %665 = vmatpush1.msra.mxu0 0.0
    %666 = vmatprep.subr.mxu0 0.0
    %667 = vmatpush1.msra.mxu0 0.0
    %668 = vmatprep.subr.mxu0 0.0
    %669 = vmatpush1.msra.mxu0 0.0
    %670 = vmatprep.subr.mxu0 0.0
    %671 = vmatpush1.msra.mxu0 0.0
    %672 = vmatprep.subr.mxu0 0.0
    %673 = vmatpush1.msra.mxu0 0.0
    %674 = vmatprep.subr.mxu0 0.0
    %675 = vmatpush1.msra.mxu0 0.0
    %676 = vmatprep.subr.mxu0 0.0
    %677 = vmatpush1.msra.mxu0 0.0
    %678 = vmatprep.subr.mxu0 0.0
    %679 = vmatpush1.msra.mxu0 0.0
    %680 = vmatprep.subr.mxu0 0.0
    %681 = vmatpush1.msra.mxu0 0.0
    %682 = vmatprep.subr.mxu0 0.0
    %683 = vmatpush1.msra.mxu0 0.0
    %684 = vmatprep.subr.mxu0 0.0
    %685 = vmatpush1.msra.mxu0 0.0
    %686 = vmatprep.subr.mxu0 0.0
    %687 = vmatpush1.msra.mxu0 0.0
    %688 = vmatprep.subr.mxu0 0.0
    %689 = vmatpush1.msra.mxu0 0.0
    %690 = vmatprep.subr.mxu0 0.0
    %691 = vmatpush1.msra.mxu0 0.0
    %692 = vmatprep.subr.mxu0 0.0
    %693 = vmatpush1.msra.mxu0 0.0
    %694 = vmatprep.subr.mxu0 0.0
    %695 = vmatpush1.msra.mxu0 0.0
    %696 = vmatprep.subr.mxu0 0.0
    %697 = vmatpush1.msra.mxu0 0.0
    %698 = vmatprep.subr.mxu0 0.0
    %699 = vmatpush1.msra.mxu0 0.0
    %700 = vmatprep.subr.mxu0 0.0
    %701 = vmatpush1.msra.mxu0 0.0
    %702 = vmatprep.subr.mxu0 0.0
    %703 = vmatpush1.msra.mxu0 0.0
    %704 = vmatprep.subr.mxu0 0.0
    %705 = vmatpush1.msra.mxu0 0.0
    %706 = vmatprep.subr.mxu0 0.0
    %707 = vmatpush1.msra.mxu0 0.0
    %708 = vmatprep.subr.mxu0 0.0
    %709 = vmatpush1.msra.mxu0 0.0
    %710 = vmatprep.mubr.f32.mxu0 0.0
    %711 = vmatmul.mubr.f32.gmra.mrb[0].mxu0 %v641
    %v712 = vpop.f32.mrb[0].mxu0
    %v713 = vadd.f32 %v639, %v712
    %v714 = vpop.f32.mrb[0].mxu0
    %715 = vmatprep.mubr.f32.mxu0 0.0
    %716 = vmatmul.mubr.f32.gmra.mrb[0].mxu0 %v644
    %v717 = vpop.f32.mrb[0].mxu0
    %v718 = vadd.f32 %v639, %v717
    %v719 = vpop.f32.mrb[0].mxu0
    %720 = vdwg.mxu0
    %v721 = vadd.f32 %v206, %v713
    %v722 = vadd.f32 %v207, %v718
    %v723 = vsel %vm216, %v721, 0.0
    %724 = vadd.xlane.f32.xlu0 %v723
    %v725 = vpop.xlane.xlu0 %724
    %v726 = vsel %vm216, %v722, 0.0
    %727 = vadd.xlane.f32.xlu0 %v726
    %v728 = vpop.xlane.xlu0 %727
    %v729 = vrcp.pop 32.0
    %v730 = vmul.f32 %v725, %v729
    %v731 = vmul.f32 %v728, %v729
    %v732 = vsub.f32 %v721, %v730
    %v733 = vsub.f32 %v722, %v731
    %v734 = vmul.f32 %v732, %v732
    %v735 = vmul.f32 %v733, %v733
    %v736 = vsel %vm216, %v734, 0.0
    %737 = vadd.xlane.f32.xlu0 %v736
    %v738 = vpop.xlane.xlu0 %737
    %v739 = vsel %vm216, %v735, 0.0
    %740 = vadd.xlane.f32.xlu0 %v739
    %v741 = vpop.xlane.xlu0 %740
    %v742 = vmul.f32 %v738, %v729
    %v743 = vmul.f32 %v741, %v729
    %v744 = vadd.f32 %v742, 1e-05
    %v745 = vadd.f32 %v743, 1e-05
    %v746 = vrsqrt.pop %v744
    %v747 = vrsqrt.pop %v745
    %v748 = vmul.f32 %v732, %v746
    %v749 = vmul.f32 %v733, %v747
    %v750 = vlaneseq
    %v751 = vshrl.u32 %v750, 7
    %v752 = vsub.s32 0, %v751
    %v753 = vrot.slane %v105, %v752
    %v754 = vmul.f32 %v748, %v753
    %v755 = vmul.f32 %v749, %v753
    %v756 = vlaneseq
    %v757 = vshrl.u32 %v756, 7
    %v758 = vsub.s32 0, %v757
    %v759 = vrot.slane %v106, %v758
    %v760 = vadd.f32 %v754, %v759
    %v761 = vadd.f32 %v755, %v759
    %v762 = vld [vmem:[%s6] sm:$0xff]
    %v763 = vld [vmem:[%s6 + $0x8] sm:$0xff]
    %v764 = vld [vmem:[%s6 + $0x10] sm:$0xff]
    %v765 = vld [vmem:[%s6 + $0x18] sm:$0xff]
    %v766 = vlaneseq
    %v767 = vshrl.u32 %v766, 7
    %v768 = vsub.s32 0, %v767
    %v769 = vrot.slane %v107, %v768
    %v771 = vsel %vm216, %v760, 0
    %v774 = vsel %vm216, %v761, 0
    %776 = vmatprep.subr.mxu0 0.0
    %777 = vmatpush1.msra.mxu0 %v762
    %778 = vmatprep.subr.mxu0 0.0
    %779 = vmatpush1.msra.mxu0 %v763
    %780 = vmatprep.subr.mxu0 0.0
    %781 = vmatpush1.msra.mxu0 %v764
    %782 = vmatprep.subr.mxu0 0.0
    %783 = vmatpush1.msra.mxu0 %v765
    %784 = vmatprep.subr.mxu0 0.0
    %785 = vmatpush1.msra.mxu0 0.0
    %786 = vmatprep.subr.mxu0 0.0
    %787 = vmatpush1.msra.mxu0 0.0
    %788 = vmatprep.subr.mxu0 0.0
    %789 = vmatpush1.msra.mxu0 0.0
    %790 = vmatprep.subr.mxu0 0.0
    %791 = vmatpush1.msra.mxu0 0.0
    %792 = vmatprep.subr.mxu0 0.0
    %793 = vmatpush1.msra.mxu0 0.0
    %794 = vmatprep.subr.mxu0 0.0
    %795 = vmatpush1.msra.mxu0 0.0
    %796 = vmatprep.subr.mxu0 0.0
    %797 = vmatpush1.msra.mxu0 0.0
    %798 = vmatprep.subr.mxu0 0.0
    %799 = vmatpush1.msra.mxu0 0.0
    %800 = vmatprep.subr.mxu0 0.0
    %801 = vmatpush1.msra.mxu0 0.0
    %802 = vmatprep.subr.mxu0 0.0
    %803 = vmatpush1.msra.mxu0 0.0
    %804 = vmatprep.subr.mxu0 0.0
    %805 = vmatpush1.msra.mxu0 0.0
    %806 = vmatprep.subr.mxu0 0.0
    %807 = vmatpush1.msra.mxu0 0.0
    %808 = vmatprep.subr.mxu0 0.0
    %809 = vmatpush1.msra.mxu0 0.0
    %810 = vmatprep.subr.mxu0 0.0
    %811 = vmatpush1.msra.mxu0 0.0
    %812 = vmatprep.subr.mxu0 0.0
    %813 = vmatpush1.msra.mxu0 0.0
    %814 = vmatprep.subr.mxu0 0.0
    %815 = vmatpush1.msra.mxu0 0.0
    %816 = vmatprep.subr.mxu0 0.0
    %817 = vmatpush1.msra.mxu0 0.0
    %818 = vmatprep.subr.mxu0 0.0
    %819 = vmatpush1.msra.mxu0 0.0
    %820 = vmatprep.subr.mxu0 0.0
    %821 = vmatpush1.msra.mxu0 0.0
    %822 = vmatprep.subr.mxu0 0.0
    %823 = vmatpush1.msra.mxu0 0.0
    %824 = vmatprep.subr.mxu0 0.0
    %825 = vmatpush1.msra.mxu0 0.0
    %826 = vmatprep.subr.mxu0 0.0
    %827 = vmatpush1.msra.mxu0 0.0
    %828 = vmatprep.subr.mxu0 0.0
    %829 = vmatpush1.msra.mxu0 0.0
    %830 = vmatprep.subr.mxu0 0.0
    %831 = vmatpush1.msra.mxu0 0.0
    %832 = vmatprep.subr.mxu0 0.0
    %833 = vmatpush1.msra.mxu0 0.0
    %834 = vmatprep.subr.mxu0 0.0
    %835 = vmatpush1.msra.mxu0 0.0
    %836 = vmatprep.subr.mxu0 0.0
    %837 = vmatpush1.msra.mxu0 0.0
    %838 = vmatprep.subr.mxu0 0.0
    %839 = vmatpush1.msra.mxu0 0.0
    %840 = vmatprep.mubr.f32.mxu0 0.0
    %841 = vmatmul.mubr.f32.gmra.mrb[0].mxu0 %v771
    %v842 = vpop.f32.mrb[0].mxu0
    %v843 = vadd.f32 %v769, %v842
    %v844 = vpop.f32.mrb[0].mxu0
    %845 = vmatprep.mubr.f32.mxu0 0.0
    %846 = vmatmul.mubr.f32.gmra.mrb[0].mxu0 %v774
    %v847 = vpop.f32.mrb[0].mxu0
    %v848 = vadd.f32 %v769, %v847
    %v849 = vpop.f32.mrb[0].mxu0
    %850 = vdwg.mxu0
    %v851 = vmax.f32 %v843, 0.0
    %v852 = vmax.f32 %v848, 0.0
    %v853 = vld [vmem:[%s7] sm:$0xff]
    %v854 = vld [vmem:[%s7 + $0x8] sm:$0xff]
    %v855 = vld [vmem:[%s7 + $0x10] sm:$0xff]
    %v856 = vld [vmem:[%s7 + $0x18] sm:$0xff]
    %v857 = vld [vmem:[%s7 + $0x20] sm:$0xff]
    %v858 = vld [vmem:[%s7 + $0x28] sm:$0xff]
    %v859 = vld [vmem:[%s7 + $0x30] sm:$0xff]
    %v860 = vld [vmem:[%s7 + $0x38] sm:$0xff]
    %v861 = vlaneseq
    %v862 = vshrl.u32 %v861, 7
    %v863 = vsub.s32 0, %v862
    %v864 = vrot.slane %v108, %v863
    %vm865 = vcmask 523264
    %v867 = vsel %vm865, %v851, 0
    %v870 = vsel %vm865, %v852, 0
    %872 = vmatprep.subr.mxu0 0.0
    %873 = vmatpush1.msra.mxu0 %v853
    %874 = vmatprep.subr.mxu0 0.0
    %875 = vmatpush1.msra.mxu0 %v854
    %876 = vmatprep.subr.mxu0 0.0
    %877 = vmatpush1.msra.mxu0 %v855
    %878 = vmatprep.subr.mxu0 0.0
    %879 = vmatpush1.msra.mxu0 %v856
    %880 = vmatprep.subr.mxu0 0.0
    %881 = vmatpush1.msra.mxu0 %v857
    %882 = vmatprep.subr.mxu0 0.0
    %883 = vmatpush1.msra.mxu0 %v858
    %884 = vmatprep.subr.mxu0 0.0
    %885 = vmatpush1.msra.mxu0 %v859
    %886 = vmatprep.subr.mxu0 0.0
    %887 = vmatpush1.msra.mxu0 %v860
    %888 = vmatprep.subr.mxu0 0.0
    %889 = vmatpush1.msra.mxu0 0.0
    %890 = vmatprep.subr.mxu0 0.0
    %891 = vmatpush1.msra.mxu0 0.0
    %892 = vmatprep.subr.mxu0 0.0
    %893 = vmatpush1.msra.mxu0 0.0
    %894 = vmatprep.subr.mxu0 0.0
    %895 = vmatpush1.msra.mxu0 0.0
    %896 = vmatprep.subr.mxu0 0.0
    %897 = vmatpush1.msra.mxu0 0.0
    %898 = vmatprep.subr.mxu0 0.0
    %899 = vmatpush1.msra.mxu0 0.0
    %900 = vmatprep.subr.mxu0 0.0
    %901 = vmatpush1.msra.mxu0 0.0
    %902 = vmatprep.subr.mxu0 0.0
    %903 = vmatpush1.msra.mxu0 0.0
    %904 = vmatprep.subr.mxu0 0.0
    %905 = vmatpush1.msra.mxu0 0.0
    %906 = vmatprep.subr.mxu0 0.0
    %907 = vmatpush1.msra.mxu0 0.0
    %908 = vmatprep.subr.mxu0 0.0
    %909 = vmatpush1.msra.mxu0 0.0
    %910 = vmatprep.subr.mxu0 0.0
    %911 = vmatpush1.msra.mxu0 0.0
    %912 = vmatprep.subr.mxu0 0.0
    %913 = vmatpush1.msra.mxu0 0.0
    %914 = vmatprep.subr.mxu0 0.0
    %915 = vmatpush1.msra.mxu0 0.0
    %916 = vmatprep.subr.mxu0 0.0
    %917 = vmatpush1.msra.mxu0 0.0
    %918 = vmatprep.subr.mxu0 0.0
    %919 = vmatpush1.msra.mxu0 0.0
    %920 = vmatprep.subr.mxu0 0.0
    %921 = vmatpush1.msra.mxu0 0.0
    %922 = vmatprep.subr.mxu0 0.0
    %923 = vmatpush1.msra.mxu0 0.0
    %924 = vmatprep.subr.mxu0 0.0
    %925 = vmatpush1.msra.mxu0 0.0
    %926 = vmatprep.subr.mxu0 0.0
    %927 = vmatpush1.msra.mxu0 0.0
    %928 = vmatprep.subr.mxu0 0.0
    %929 = vmatpush1.msra.mxu0 0.0
    %930 = vmatprep.subr.mxu0 0.0
    %931 = vmatpush1.msra.mxu0 0.0
    %932 = vmatprep.subr.mxu0 0.0
    %933 = vmatpush1.msra.mxu0 0.0
    %934 = vmatprep.subr.mxu0 0.0
    %935 = vmatpush1.msra.mxu0 0.0
    %936 = vmatprep.mubr.f32.mxu0 0.0
    %937 = vmatmul.mubr.f32.gmra.mrb[0].mxu0 %v867
    %v938 = vpop.f32.mrb[0].mxu0
    %v939 = vadd.f32 %v864, %v938
    %v940 = vpop.f32.mrb[0].mxu0
    %941 = vmatprep.mubr.f32.mxu0 0.0
    %942 = vmatmul.mubr.f32.gmra.mrb[0].mxu0 %v870
    %v943 = vpop.f32.mrb[0].mxu0
    %v944 = vadd.f32 %v864, %v943
    %v945 = vpop.f32.mrb[0].mxu0
    %946 = vdwg.mxu0
    %v947 = vadd.f32 %v760, %v939
    %v948 = vadd.f32 %v761, %v944
    %v949 = vsel %vm216, %v947, 0.0
    %950 = vadd.xlane.f32.xlu0 %v949
    %v951 = vpop.xlane.xlu0 %950
    %v952 = vsel %vm216, %v948, 0.0
    %953 = vadd.xlane.f32.xlu0 %v952
    %v954 = vpop.xlane.xlu0 %953
    %v955 = vmul.f32 %v951, %v729
    %v956 = vmul.f32 %v954, %v729
    %v957 = vsub.f32 %v947, %v955
    %v958 = vsub.f32 %v948, %v956
    %v959 = vmul.f32 %v957, %v957
    %v960 = vmul.f32 %v958, %v958
    %v961 = vsel %vm216, %v959, 0.0
    %962 = vadd.xlane.f32.xlu0 %v961
    %v963 = vpop.xlane.xlu0 %962
    %v964 = vsel %vm216, %v960, 0.0
    %965 = vadd.xlane.f32.xlu0 %v964
    %v966 = vpop.xlane.xlu0 %965
    %v967 = vmul.f32 %v963, %v729
    %v968 = vmul.f32 %v966, %v729
    %v969 = vadd.f32 %v967, 1e-05
    %v970 = vadd.f32 %v968, 1e-05
    %v971 = vrsqrt.pop %v969
    %v972 = vrsqrt.pop %v970
    %v973 = vmul.f32 %v957, %v971
    %v974 = vmul.f32 %v958, %v972
    %v975 = vlaneseq
    %v976 = vshrl.u32 %v975, 7
    %v977 = vsub.s32 0, %v976
    %v978 = vrot.slane %v109, %v977
    %v979 = vmul.f32 %v973, %v978
    %v980 = vmul.f32 %v974, %v978
    %v981 = vlaneseq
    %v982 = vshrl.u32 %v981, 7
    %v983 = vsub.s32 0, %v982
    %v984 = vrot.slane %v110, %v983
    %v985 = vadd.f32 %v979, %v984
    %v986 = vadd.f32 %v980, %v984
    %v987 = vld [vmem:[#allocation10] sm:$0xff]
    %v988 = vld [vmem:[#allocation10 + $0x8] sm:$0xff]
    %v989 = vld [vmem:[#allocation10 + $0x10] sm:$0xff]
    %v990 = vld [vmem:[#allocation10 + $0x18] sm:$0xff]
    %v991 = vlaneseq
    %v992 = vshrl.u32 %v991, 7
    %v993 = vsub.s32 0, %v992
    %v994 = vrot.slane %v111, %v993
    %v996 = vsel %vm216, %v985, 0
    %v999 = vsel %vm216, %v986, 0
    %1001 = vmatprep.subr.mxu0 0.0
    %1002 = vmatpush1.msra.mxu0 %v987
    %1003 = vmatprep.subr.mxu0 0.0
    %1004 = vmatpush1.msra.mxu0 %v988
    %1005 = vmatprep.subr.mxu0 0.0
    %1006 = vmatpush1.msra.mxu0 %v989
    %1007 = vmatprep.subr.mxu0 0.0
    %1008 = vmatpush1.msra.mxu0 %v990
    %1009 = vmatprep.subr.mxu0 0.0
    %1010 = vmatpush1.msra.mxu0 0.0
    %1011 = vmatprep.subr.mxu0 0.0
    %1012 = vmatpush1.msra.mxu0 0.0
    %1013 = vmatprep.subr.mxu0 0.0
    %1014 = vmatpush1.msra.mxu0 0.0
    %1015 = vmatprep.subr.mxu0 0.0
    %1016 = vmatpush1.msra.mxu0 0.0
    %1017 = vmatprep.subr.mxu0 0.0
    %1018 = vmatpush1.msra.mxu0 0.0
    %1019 = vmatprep.subr.mxu0 0.0
    %1020 = vmatpush1.msra.mxu0 0.0
    %1021 = vmatprep.subr.mxu0 0.0
    %1022 = vmatpush1.msra.mxu0 0.0
    %1023 = vmatprep.subr.mxu0 0.0
    %1024 = vmatpush1.msra.mxu0 0.0
    %1025 = vmatprep.subr.mxu0 0.0
    %1026 = vmatpush1.msra.mxu0 0.0
    %1027 = vmatprep.subr.mxu0 0.0
    %1028 = vmatpush1.msra.mxu0 0.0
    %1029 = vmatprep.subr.mxu0 0.0
    %1030 = vmatpush1.msra.mxu0 0.0
    %1031 = vmatprep.subr.mxu0 0.0
    %1032 = vmatpush1.msra.mxu0 0.0
    %1033 = vmatprep.subr.mxu0 0.0
    %1034 = vmatpush1.msra.mxu0 0.0
    %1035 = vmatprep.subr.mxu0 0.0
    %1036 = vmatpush1.msra.mxu0 0.0
    %1037 = vmatprep.subr.mxu0 0.0
    %1038 = vmatpush1.msra.mxu0 0.0
    %1039 = vmatprep.subr.mxu0 0.0
    %1040 = vmatpush1.msra.mxu0 0.0
    %1041 = vmatprep.subr.mxu0 0.0
    %1042 = vmatpush1.msra.mxu0 0.0
    %1043 = vmatprep.subr.mxu0 0.0
    %1044 = vmatpush1.msra.mxu0 0.0
    %1045 = vmatprep.subr.mxu0 0.0
    %1046 = vmatpush1.msra.mxu0 0.0
    %1047 = vmatprep.subr.mxu0 0.0
    %1048 = vmatpush1.msra.mxu0 0.0
    %1049 = vmatprep.subr.mxu0 0.0
    %1050 = vmatpush1.msra.mxu0 0.0
    %1051 = vmatprep.subr.mxu0 0.0
    %1052 = vmatpush1.msra.mxu0 0.0
    %1053 = vmatprep.subr.mxu0 0.0
    %1054 = vmatpush1.msra.mxu0 0.0
    %1055 = vmatprep.subr.mxu0 0.0
    %1056 = vmatpush1.msra.mxu0 0.0
    %1057 = vmatprep.subr.mxu0 0.0
    %1058 = vmatpush1.msra.mxu0 0.0
    %1059 = vmatprep.subr.mxu0 0.0
    %1060 = vmatpush1.msra.mxu0 0.0
    %1061 = vmatprep.subr.mxu0 0.0
    %1062 = vmatpush1.msra.mxu0 0.0
    %1063 = vmatprep.subr.mxu0 0.0
    %1064 = vmatpush1.msra.mxu0 0.0
    %1065 = vmatprep.mubr.f32.mxu0 0.0
    %1066 = vmatmul.mubr.f32.gmra.mrb[0].mxu0 %v996
    %v1067 = vpop.f32.mrb[0].mxu0
    %v1068 = vadd.f32 %v994, %v1067
    %v1069 = vpop.f32.mrb[0].mxu0
    %1070 = vmatprep.mubr.f32.mxu0 0.0
    %1071 = vmatmul.mubr.f32.gmra.mrb[0].mxu0 %v999
    %v1072 = vpop.f32.mrb[0].mxu0
    %v1073 = vadd.f32 %v994, %v1072
    %v1074 = vpop.f32.mrb[0].mxu0
    %1075 = vdwg.mxu0
    %1076 = vst [vmem:[#allocation11] sm:$0xff] %v1068
    %1077 = vst [vmem:[#allocation11 + $0x8] sm:$0xff] %v1073
    // Predicated region
    $region62: #{tpu_custom_call.1} parent=1 // pred_check
      _
    $region63: #{tpu_custom_call.1} parent=1 // pred_check_branch
      %1079 = sbr.rel (0) target = $region65
    $region64: #{tpu_custom_call.1} parent=1 // pred_region
      %s1081 = ssub.s32 256, 256
      %1082 = vsyncadd [#allocation4], %s1081
      %s1083 = sshll.u32 [#allocation11], 4
      %s1084 = int_to_ptr.vmem [resolvable:$true] %s1083
      %1089 = dma.vmem_to_hbm [thread:$0]  %s1084, 256, %s10, [#allocation4], 128, 128, 8
    $region65: #{tpu_custom_call.1} parent=1 // pred_fallthru
      _
    // Predicated region
    $region66: #{tpu_custom_call.1} parent=1 // pred_check
      _
    $region67: #{tpu_custom_call.1} parent=1 // pred_check_branch
      %1091 = sbr.rel (0) target = $region69
    $region68: #{tpu_custom_call.1} parent=1 // pred_region
      %1092 = dma.done [#allocation4], 256
    $region69: #{tpu_custom_call.1} parent=1 // pred_fallthru
      _
    %1093 = vsyncpa [#allocation3], 1
    %1094 = vsyncpa [#allocation6], 1
    %1095 = vsyncpa [#allocation9], 1
    %1096 = vsyncpa [#allocation4], 1

</llo_original>
